<compile_context>
chip_gen: v5e
topology: v5e:2x2
jax: 0.10.0
libtpu: 0.0.40
codegen_flags: <defaults>
</compile_context>

<pallas_src>
import jax
import jax.numpy as jnp
from jax.experimental import pallas as pl
from jax.experimental.pallas import tpu as pltpu

# ---------------- problem sizes (consistent with the module defaults) --------
B, C, H, W = 2, 32, 16, 16
RED = 16                   # reduction_ratio (PyTorch default)
CH = C // RED              # hidden width of the gate MLP (= 2)


# ============================ fused channel-gate kernel =======================
def _channel_gate_kernel(x_ref, wpack_ref, y_ref):
    """One batch-tile of the ChannelGate forward.

    x_ref     : (bb, C, HW)        input tile, lane-dense (HW multiple of 128)
    wpack_ref : (2C + 1, CH + 1)   rows [0,C)  = W1^T
                                   rows [C,2C) = W2, with column CH = b2
                                   row  2C     = b1 (columns [0,CH))
    y_ref     : (bb, C, HW)        gated output tile
    """
    bb, c, hw = x_ref.shape
    ch = wpack_ref.shape[1] - 1

    x = x_ref[...].astype(jnp.float32)                     # (bb, C, HW)

    # ---- global pooling -----------------------------------------------------
    # sum-pool as a ones-column matmul on the (otherwise idle) MXU; max-pool as
    # an XLU lane reduce. Both results land in (bb, C, 1) sublane layout, which
    # is exactly what the final broadcast scale wants.
    x2 = x.reshape(bb * c, hw)                             # free: merge leading dims
    ones_col = jnp.ones((hw, 1), jnp.float32)
    ssum = jnp.dot(x2, ones_col, preferred_element_type=jnp.float32)  # (bb*C, 1)
    avg = (ssum * (1.0 / hw)).reshape(bb, c, 1)            # (bb, C, 1)
    mx = jnp.max(x, axis=2, keepdims=True)                 # (bb, C, 1)

    # ---- packed weights: static slices of one VMEM buffer (free) -------------
    w1t = wpack_ref[0:c, 0:ch]                             # (C, CH)  == W1^T
    w2 = wpack_ref[c:2 * c, 0:ch]                          # (C, CH)  == W2
    b2 = wpack_ref[c:2 * c, ch:ch + 1]                     # (C, 1)
    b1 = wpack_ref[2 * c:2 * c + 1, 0:ch]                  # (1, CH)

    # ---- shared micro-MLP on the VPU (no MXU FIFO, no concatenations) --------
    def mlp(p):                                            # p: (bb, C, 1)
        h = jnp.sum(p * w1t[None, :, :], axis=1, keepdims=True)     # (bb, 1, CH)
        h = jnp.maximum(h + b1[None, :, :], 0.0)
        att = jnp.sum(h * w2[None, :, :], axis=2, keepdims=True)    # (bb, C, 1)
        return att + b2[None, :, :]

    # channel_att_sum = mlp(avg_pool) + mlp(max_pool); sigmoid; broadcast scale.
    scale = jax.nn.sigmoid(mlp(avg) + mlp(mx))             # (bb, C, 1), sublane layout

    # Lane-broadcast + VPU multiply; full-width (HW=256) unmasked store.
    y_ref[...] = (x * scale).astype(y_ref.dtype)


# ============================ wrapper =========================================
def _pack_params(params):
    """Pack W1^T, W2, b1, b2 into ONE f32 buffer (single weight DMA)."""
    w1 = params["w1"].astype(jnp.float32)                  # (CH, C)
    w2 = params["w2"].astype(jnp.float32)                  # (C, CH)
    b1 = params["b1"].astype(jnp.float32)                  # (CH,)
    b2 = params["b2"].astype(jnp.float32)                  # (C,)
    ch, c = w1.shape
    pack = jnp.zeros((2 * c + 1, ch + 1), jnp.float32)
    pack = pack.at[0:c, 0:ch].set(w1.T)                    # W1^T
    pack = pack.at[c:2 * c, 0:ch].set(w2)                  # W2
    pack = pack.at[c:2 * c, ch].set(b2)                    # b2 as a sublane column
    pack = pack.at[2 * c, 0:ch].set(b1)                    # b1 row
    return pack


def channel_gate(x, params, *, vmem_budget_bytes=8 * 1024 * 1024):
    b, c, h, w = x.shape
    hw = h * w
    assert hw % 128 == 0 and c % 8 == 0, "expect lane/sublane-friendly shapes"

    pack = _pack_params(params)
    x3 = x.reshape(b, c, hw)                               # lane-dense carry layout

    # Single VMEM-resident step when the whole problem is small (the kernel is
    # overhead-bound there); otherwise one batch item per grid step so VMEM is
    # bounded and megacore chips (v7x) can shard the parallel axis.
    itemsize = jnp.dtype(x.dtype).itemsize
    per_batch_bytes = 2 * c * hw * itemsize                # input + output slab
    bb = b if b * per_batch_bytes <= vmem_budget_bytes else 1
    grid = (b // bb,)

    cp_kwargs = dict(dimension_semantics=("parallel",))
    vmem_need = 2 * bb * per_batch_bytes + pack.size * 4 + (1 << 20)
    if vmem_need > 16 * 1024 * 1024:                       # smallest (v5e) scoped default
        cp_kwargs["vmem_limit_bytes"] = int(vmem_need)

    y3 = pl.pallas_call(
        _channel_gate_kernel,
        out_shape=jax.ShapeDtypeStruct((b, c, hw), x.dtype),
        grid=grid,
        in_specs=[
            pl.BlockSpec((bb, c, hw), lambda i: (i, 0, 0)),
            pl.BlockSpec(pack.shape, lambda i: (0, 0)),    # resident weight pack
        ],
        out_specs=pl.BlockSpec((bb, c, hw), lambda i: (i, 0, 0)),
        compiler_params=pltpu.CompilerParams(**cp_kwargs),
    )(x3, pack)
    return y3.reshape(b, c, h, w)


# ============================ parameters & reference ==========================
def init_params(key):
    ks = jax.random.split(key, 4)
    s = 0.2
    return {
        # nn.Linear(C, CH): weight (CH, C), bias (CH,)
        "w1": s * jax.random.normal(ks[0], (CH, C), jnp.float32),
        "b1": s * jax.random.normal(ks[1], (CH,), jnp.float32),
        # nn.Linear(CH, C): weight (C, CH), bias (C,)
        "w2": s * jax.random.normal(ks[2], (C, CH), jnp.float32),
        "b2": s * jax.random.normal(ks[3], (C,), jnp.float32),
    }


def reference_forward(x, params):
    """Pure-JAX reference mirroring the PyTorch ChannelGate forward."""
    avg = jnp.mean(x, axis=(2, 3))                         # F.avg_pool2d full-spatial
    mx = jnp.max(x, axis=(2, 3))                           # F.max_pool2d full-spatial

    def mlp(v):
        h = jnp.maximum(v @ params["w1"].T + params["b1"], 0.0)
        return h @ params["w2"].T + params["b2"]

    att = mlp(avg) + mlp(mx)
    scale = jax.nn.sigmoid(att)[:, :, None, None]
    return x * scale


if __name__ == "__main__":
    key = jax.random.PRNGKey(0)
    kx, kp = jax.random.split(key)
    x = jax.random.normal(kx, (B, C, H, W), jnp.float32)
    params = init_params(kp)

    y = jax.jit(channel_gate)(x, params)
    jax.block_until_ready(y)

    y_ref = reference_forward(x, params)
    assert jnp.allclose(y, y_ref, rtol=2e-4, atol=2e-4), "ChannelGate output mismatch"

    print("KERNEL_OK")
</pallas_src>

<mosaic_0001>
module attributes {stable_mosaic.version = 11 : i64} {
  func.func @_channel_gate_kernel(%arg0: i32, %arg1: memref<2x32x256xf32, #tpu.memory_space<vmem>>, %arg2: memref<65x3xf32, #tpu.memory_space<vmem>>, %arg3: memref<2x32x256xf32, #tpu.memory_space<vmem>>) attributes {dimension_semantics = [#tpu.dimension_semantics<parallel>], iteration_bounds = array<i64: 1>, scalar_prefetch = 0 : i64, scratch_operands = 0 : i64, tpu.core_type = #tpu.core_type<tc>, window_params = [{transform_indices = @transform_0, window_bounds = array<i64: 2, 32, 256>}, {pipeline_mode = #tpu.pipeline_mode<synchronous>, transform_indices = @transform_1, window_bounds = array<i64: 65, 3>}, {transform_indices = @transform_2, window_bounds = array<i64: 2, 32, 256>}]} {
    %c0 = arith.constant 0 : index
    %c0_0 = arith.constant 0 : index
    %c0_1 = arith.constant 0 : index
    %0 = vector.load %arg1[%c0, %c0_0, %c0_1] : memref<2x32x256xf32, #tpu.memory_space<vmem>>, vector<2x32x256xf32>
    %1 = vector.shape_cast %0 : vector<2x32x256xf32> to vector<64x256xf32>
    %cst = arith.constant 1.000000e+00 : f32
    %2 = vector.broadcast %cst : f32 to vector<256x1xf32>
    %cst_2 = arith.constant dense<0.000000e+00> : vector<64x1xf32>
    %3 = tpu.matmul %1, %2, %cst_2 {dimension_numbers = #tpu.dot_dimension_numbers<[1], [0], [0], [1], [0, 0, 1, 1], [], []>} : vector<64x256xf32>, vector<256x1xf32>, vector<64x1xf32> -> vector<64x1xf32>
    %cst_3 = arith.constant 3.906250e-03 : f32
    %4 = vector.broadcast %cst_3 : f32 to vector<64x1xf32>
    %5 = arith.mulf %3, %4 : vector<64x1xf32>
    %6 = vector.shape_cast %5 : vector<64x1xf32> to vector<2x32x1xf32>
    %cst_4 = arith.constant dense<0xFF800000> : vector<2x32xf32>
    %7 = vector.multi_reduction <maximumf>, %0, %cst_4 [2] : vector<2x32x256xf32> to vector<2x32xf32>
    %8 = vector.shape_cast %7 : vector<2x32xf32> to vector<2x32x1xf32>
    %c0_5 = arith.constant 0 : index
    %c0_6 = arith.constant 0 : index
    %9 = vector.load %arg2[%c0_5, %c0_6] : memref<65x3xf32, #tpu.memory_space<vmem>>, vector<32x2xf32>
    %c32 = arith.constant 32 : index
    %c0_7 = arith.constant 0 : index
    %10 = vector.load %arg2[%c32, %c0_7] : memref<65x3xf32, #tpu.memory_space<vmem>>, vector<32x2xf32>
    %c32_8 = arith.constant 32 : index
    %c2 = arith.constant 2 : index
    %11 = vector.load %arg2[%c32_8, %c2] : memref<65x3xf32, #tpu.memory_space<vmem>>, vector<32x1xf32>
    %c64 = arith.constant 64 : index
    %c0_9 = arith.constant 0 : index
    %12 = vector.load %arg2[%c64, %c0_9] : memref<65x3xf32, #tpu.memory_space<vmem>>, vector<1x2xf32>
    %13 = vector.shape_cast %9 : vector<32x2xf32> to vector<1x32x2xf32>
    %14 = vector.broadcast %6 : vector<2x32x1xf32> to vector<2x32x2xf32>
    %15 = vector.broadcast %13 : vector<1x32x2xf32> to vector<2x32x2xf32>
    %16 = arith.mulf %14, %15 : vector<2x32x2xf32>
    %cst_10 = arith.constant dense<0.000000e+00> : vector<2x2xf32>
    %17 = vector.multi_reduction <add>, %16, %cst_10 [1] : vector<2x32x2xf32> to vector<2x2xf32>
    %18 = vector.shape_cast %17 : vector<2x2xf32> to vector<2x1x2xf32>
    %19 = vector.shape_cast %12 : vector<1x2xf32> to vector<1x1x2xf32>
    %20 = vector.broadcast %19 : vector<1x1x2xf32> to vector<2x1x2xf32>
    %21 = arith.addf %18, %20 : vector<2x1x2xf32>
    %cst_11 = arith.constant 0.000000e+00 : f32
    %22 = vector.broadcast %cst_11 : f32 to vector<2x1x2xf32>
    %23 = arith.maximumf %21, %22 : vector<2x1x2xf32>
    %24 = vector.shape_cast %10 : vector<32x2xf32> to vector<1x32x2xf32>
    %25 = vector.broadcast %23 : vector<2x1x2xf32> to vector<2x32x2xf32>
    %26 = vector.broadcast %24 : vector<1x32x2xf32> to vector<2x32x2xf32>
    %27 = arith.mulf %25, %26 : vector<2x32x2xf32>
    %cst_12 = arith.constant dense<0.000000e+00> : vector<2x32xf32>
    %28 = vector.multi_reduction <add>, %27, %cst_12 [2] : vector<2x32x2xf32> to vector<2x32xf32>
    %29 = vector.shape_cast %28 : vector<2x32xf32> to vector<2x32x1xf32>
    %30 = vector.shape_cast %11 : vector<32x1xf32> to vector<1x32x1xf32>
    %31 = vector.broadcast %30 : vector<1x32x1xf32> to vector<2x32x1xf32>
    %32 = arith.addf %29, %31 : vector<2x32x1xf32>
    %33 = vector.shape_cast %9 : vector<32x2xf32> to vector<1x32x2xf32>
    %34 = vector.broadcast %8 : vector<2x32x1xf32> to vector<2x32x2xf32>
    %35 = vector.broadcast %33 : vector<1x32x2xf32> to vector<2x32x2xf32>
    %36 = arith.mulf %34, %35 : vector<2x32x2xf32>
    %cst_13 = arith.constant dense<0.000000e+00> : vector<2x2xf32>
    %37 = vector.multi_reduction <add>, %36, %cst_13 [1] : vector<2x32x2xf32> to vector<2x2xf32>
    %38 = vector.shape_cast %37 : vector<2x2xf32> to vector<2x1x2xf32>
    %39 = vector.shape_cast %12 : vector<1x2xf32> to vector<1x1x2xf32>
    %40 = vector.broadcast %39 : vector<1x1x2xf32> to vector<2x1x2xf32>
    %41 = arith.addf %38, %40 : vector<2x1x2xf32>
    %cst_14 = arith.constant 0.000000e+00 : f32
    %42 = vector.broadcast %cst_14 : f32 to vector<2x1x2xf32>
    %43 = arith.maximumf %41, %42 : vector<2x1x2xf32>
    %44 = vector.shape_cast %10 : vector<32x2xf32> to vector<1x32x2xf32>
    %45 = vector.broadcast %43 : vector<2x1x2xf32> to vector<2x32x2xf32>
    %46 = vector.broadcast %44 : vector<1x32x2xf32> to vector<2x32x2xf32>
    %47 = arith.mulf %45, %46 : vector<2x32x2xf32>
    %cst_15 = arith.constant dense<0.000000e+00> : vector<2x32xf32>
    %48 = vector.multi_reduction <add>, %47, %cst_15 [2] : vector<2x32x2xf32> to vector<2x32xf32>
    %49 = vector.shape_cast %48 : vector<2x32xf32> to vector<2x32x1xf32>
    %50 = vector.shape_cast %11 : vector<32x1xf32> to vector<1x32x1xf32>
    %51 = vector.broadcast %50 : vector<1x32x1xf32> to vector<2x32x1xf32>
    %52 = arith.addf %49, %51 : vector<2x32x1xf32>
    %53 = arith.addf %32, %52 : vector<2x32x1xf32>
    %54 = arith.negf %53 : vector<2x32x1xf32>
    %55 = math.exp %54 : vector<2x32x1xf32>
    %cst_16 = arith.constant 1.000000e+00 : f32
    %56 = vector.broadcast %cst_16 : f32 to vector<2x32x1xf32>
    %57 = arith.addf %56, %55 : vector<2x32x1xf32>
    %58 = arith.divf %56, %57 : vector<2x32x1xf32>
    %59 = vector.broadcast %58 : vector<2x32x1xf32> to vector<2x32x256xf32>
    %60 = arith.mulf %0, %59 : vector<2x32x256xf32>
    %c0_17 = arith.constant 0 : index
    %c0_18 = arith.constant 0 : index
    %c0_19 = arith.constant 0 : index
    %61 = vector.load %arg3[%c0_17, %c0_18, %c0_19] : memref<2x32x256xf32, #tpu.memory_space<vmem>>, vector<2x32x256xf32>
    tpu.vector_store %arg3[%c0_17, %c0_18, %c0_19], %60 {strides = array<i32>} : memref<2x32x256xf32, #tpu.memory_space<vmem>>, vector<2x32x256xf32>,
    return
  }
  func.func @transform_0(%arg0: i32) -> (i32, i32, i32) {
    %c0_i32 = arith.constant 0 : i32
    %c0_i32_0 = arith.constant 0 : i32
    %c0_i32_1 = arith.constant 0 : i32
    return %arg0, %c0_i32, %c0_i32_0 : i32, i32, i32
  }
  func.func @transform_1(%arg0: i32) -> (i32, i32) {
    %c0_i32 = arith.constant 0 : i32
    %c0_i32_0 = arith.constant 0 : i32
    %c0_i32_1 = arith.constant 0 : i32
    return %c0_i32, %c0_i32_0 : i32, i32
  }
  func.func @transform_2(%arg0: i32) -> (i32, i32, i32) {
    %c0_i32 = arith.constant 0 : i32
    %c0_i32_0 = arith.constant 0 : i32
    %c0_i32_1 = arith.constant 0 : i32
    return %arg0, %c0_i32, %c0_i32_0 : i32, i32, i32
  }
}

</mosaic_0001>

<llo_original>
// kernel: channel_gate.1
$region0: #{channel_gate.1}
  #allocation0 [shape = 'u32[]', space=smem, size = 0x4, offset = 0x4, fixed_abs, tag = 'smem constant byte address 0x4 - core index']
  #allocation1 [shape = 'u32[72,128]{1,0:T(1,128)}', space=vmem, size = 0x9000, scoped, tag = 'internal scratch']
  %s0 = inlined_call_operand.vmem [shape: f32[2,32,256], index: 0, kind: input, shape index: {}]
  %s1 = inlined_call_operand.vmem [shape: f32[65,3], index: 1, kind: input, shape index: {}]
  %s2 = inlined_call_operand.vmem [shape: f32[2,32,256], index: 2, kind: output, shape index: {}]
  %s3 = sld [smem:[#allocation0]]
  $region18: #{channel_gate.1} parent=0
    _
  %s5 = ssub.s32 1, %s3
  %s6 = scalar_select 0, %s5, %s3
  // Predicated region
  $region2: #{channel_gate.1} parent=0 // pred_check
    _
  $region3: #{channel_gate.1} parent=0 // pred_check_branch
    %8 = sbr.rel (0) target = $region5
  $region4: #{channel_gate.1} parent=0 // pred_region
    _
  $region5: #{channel_gate.1} parent=0 // pred_fallthru
    _
  // Predicated region
  $region6: #{channel_gate.1} parent=0 // pred_check
    _
  $region7: #{channel_gate.1} parent=0 // pred_check_branch
    %10 = sbr.rel (0) target = $region9
  $region8: #{channel_gate.1} parent=0 // pred_region
    _
  $region9: #{channel_gate.1} parent=0 // pred_fallthru
    _
  %v11 = vld [vmem:[%s0] sm:$0xff]
  %v12 = vld [vmem:[%s0 + $0x8] sm:$0xff]
  %v13 = vld [vmem:[%s0 + $0x10] sm:$0xff]
  %v14 = vld [vmem:[%s0 + $0x18] sm:$0xff]
  %v15 = vld [vmem:[%s0 + $0x20] sm:$0xff]
  %v16 = vld [vmem:[%s0 + $0x28] sm:$0xff]
  %v17 = vld [vmem:[%s0 + $0x30] sm:$0xff]
  %v18 = vld [vmem:[%s0 + $0x38] sm:$0xff]
  %v19 = vld [vmem:[%s0 + $0x40] sm:$0xff]
  %v20 = vld [vmem:[%s0 + $0x48] sm:$0xff]
  %v21 = vld [vmem:[%s0 + $0x50] sm:$0xff]
  %v22 = vld [vmem:[%s0 + $0x58] sm:$0xff]
  %v23 = vld [vmem:[%s0 + $0x60] sm:$0xff]
  %v24 = vld [vmem:[%s0 + $0x68] sm:$0xff]
  %v25 = vld [vmem:[%s0 + $0x70] sm:$0xff]
  %v26 = vld [vmem:[%s0 + $0x78] sm:$0xff]
  %27 = vmatpush.msra.mxu0 1.0
  %28 = vmatpush.msra.mxu0 1.0
  %29 = vmatpush.msra.mxu0 1.0
  %30 = vmatpush.msra.mxu0 1.0
  %31 = vmatpush.msra.mxu0 1.0
  %32 = vmatpush.msra.mxu0 1.0
  %33 = vmatpush.msra.mxu0 1.0
  %34 = vmatpush.msra.mxu0 1.0
  %35 = vmatpush.msra.mxu0 1.0
  %36 = vmatpush.msra.mxu0 1.0
  %37 = vmatpush.msra.mxu0 1.0
  %38 = vmatpush.msra.mxu0 1.0
  %39 = vmatpush.msra.mxu0 1.0
  %40 = vmatpush.msra.mxu0 1.0
  %41 = vmatpush.msra.mxu0 1.0
  %42 = vmatpush.msra.mxu0 1.0
  %43 = vmatmul.f32.gmra.mxu0 %v11
  %v44 = vpop.f32.mrf.mxu0
  %v45 = vadd.f32 0.0, %v44
  %46 = vmatmul.f32.gmra.mxu0 %v13
  %v47 = vpop.f32.mrf.mxu0
  %v48 = vadd.f32 0.0, %v47
  %49 = vmatmul.f32.gmra.mxu0 %v15
  %v50 = vpop.f32.mrf.mxu0
  %v51 = vadd.f32 0.0, %v50
  %52 = vmatmul.f32.gmra.mxu0 %v17
  %v53 = vpop.f32.mrf.mxu0
  %v54 = vadd.f32 0.0, %v53
  %55 = vmatmul.f32.gmra.mxu0 %v19
  %v56 = vpop.f32.mrf.mxu0
  %v57 = vadd.f32 0.0, %v56
  %58 = vmatmul.f32.gmra.mxu0 %v21
  %v59 = vpop.f32.mrf.mxu0
  %v60 = vadd.f32 0.0, %v59
  %61 = vmatmul.f32.gmra.mxu0 %v23
  %v62 = vpop.f32.mrf.mxu0
  %v63 = vadd.f32 0.0, %v62
  %64 = vmatmul.f32.gmra.mxu0 %v25
  %v65 = vpop.f32.mrf.mxu0
  %v66 = vadd.f32 0.0, %v65
  %67 = vdwg.mxu0
  %68 = vmatpush.msra.mxu0 1.0
  %69 = vmatpush.msra.mxu0 1.0
  %70 = vmatpush.msra.mxu0 1.0
  %71 = vmatpush.msra.mxu0 1.0
  %72 = vmatpush.msra.mxu0 1.0
  %73 = vmatpush.msra.mxu0 1.0
  %74 = vmatpush.msra.mxu0 1.0
  %75 = vmatpush.msra.mxu0 1.0
  %76 = vmatpush.msra.mxu0 1.0
  %77 = vmatpush.msra.mxu0 1.0
  %78 = vmatpush.msra.mxu0 1.0
  %79 = vmatpush.msra.mxu0 1.0
  %80 = vmatpush.msra.mxu0 1.0
  %81 = vmatpush.msra.mxu0 1.0
  %82 = vmatpush.msra.mxu0 1.0
  %83 = vmatpush.msra.mxu0 1.0
  %84 = vmatmul.f32.gmra.mxu0 %v12
  %v85 = vpop.f32.mrf.mxu0
  %v86 = vadd.f32 %v45, %v85
  %87 = vmatmul.f32.gmra.mxu0 %v14
  %v88 = vpop.f32.mrf.mxu0
  %v89 = vadd.f32 %v48, %v88
  %90 = vmatmul.f32.gmra.mxu0 %v16
  %v91 = vpop.f32.mrf.mxu0
  %v92 = vadd.f32 %v51, %v91
  %93 = vmatmul.f32.gmra.mxu0 %v18
  %v94 = vpop.f32.mrf.mxu0
  %v95 = vadd.f32 %v54, %v94
  %96 = vmatmul.f32.gmra.mxu0 %v20
  %v97 = vpop.f32.mrf.mxu0
  %v98 = vadd.f32 %v57, %v97
  %99 = vmatmul.f32.gmra.mxu0 %v22
  %v100 = vpop.f32.mrf.mxu0
  %v101 = vadd.f32 %v60, %v100
  %102 = vmatmul.f32.gmra.mxu0 %v24
  %v103 = vpop.f32.mrf.mxu0
  %v104 = vadd.f32 %v63, %v103
  %105 = vmatmul.f32.gmra.mxu0 %v26
  %v106 = vpop.f32.mrf.mxu0
  %v107 = vadd.f32 %v66, %v106
  %108 = vdwg.mxu0
  %v109 = vmul.f32 %v86, 0.00390625
  %v110 = vmul.f32 %v89, 0.00390625
  %v111 = vmul.f32 %v92, 0.00390625
  %v112 = vmul.f32 %v95, 0.00390625
  %v113 = vmul.f32 %v98, 0.00390625
  %v114 = vmul.f32 %v101, 0.00390625
  %v115 = vmul.f32 %v104, 0.00390625
  %v116 = vmul.f32 %v107, 0.00390625
  %v117 = vmax.f32 %v11, %v12
  %118 = vmax.xlane.f32.xlu0 %v117
  %v119 = vpop.xlane.xlu0 %118
  %v120 = vmax.f32 %v13, %v14
  %121 = vmax.xlane.f32.xlu0 %v120
  %v122 = vpop.xlane.xlu0 %121
  %v123 = vmax.f32 %v15, %v16
  %124 = vmax.xlane.f32.xlu0 %v123
  %v125 = vpop.xlane.xlu0 %124
  %v126 = vmax.f32 %v17, %v18
  %127 = vmax.xlane.f32.xlu0 %v126
  %v128 = vpop.xlane.xlu0 %127
  %v129 = vmax.f32 %v19, %v20
  %130 = vmax.xlane.f32.xlu0 %v129
  %v131 = vpop.xlane.xlu0 %130
  %v132 = vmax.f32 %v21, %v22
  %133 = vmax.xlane.f32.xlu0 %v132
  %v134 = vpop.xlane.xlu0 %133
  %v135 = vmax.f32 %v23, %v24
  %136 = vmax.xlane.f32.xlu0 %v135
  %v137 = vpop.xlane.xlu0 %136
  %v138 = vmax.f32 %v25, %v26
  %139 = vmax.xlane.f32.xlu0 %v138
  %v140 = vpop.xlane.xlu0 %139
  %v141 = vld [vmem:[%s1] sm:$0xff]
  %v142 = vld [vmem:[%s1 + $0x8] sm:$0xff]
  %v143 = vld [vmem:[%s1 + $0x10] sm:$0xff]
  %v144 = vld [vmem:[%s1 + $0x18] sm:$0xff]
  %v145 = vld [vmem:[%s1 + $0x20] sm:$0xff]
  %v146 = vld [vmem:[%s1 + $0x28] sm:$0xff]
  %v147 = vld [vmem:[%s1 + $0x30] sm:$0xff]
  %v148 = vld [vmem:[%s1 + $0x38] sm:$0xff]
  %v149 = vld [vmem:[%s1 + $0x40] sm:$0x1]
  %151 = vset.pattern.permute.xlu0 0
  %152 = vperm.xlu0 %151, %v109
  %v153 = vpop.permute.xlu0 %152
  %156 = vset.pattern.permute.xlu0 0
  %157 = vperm.xlu0 %156, %v110
  %v158 = vpop.permute.xlu0 %157
  %161 = vset.pattern.permute.xlu0 0
  %162 = vperm.xlu0 %161, %v111
  %v163 = vpop.permute.xlu0 %162
  %166 = vset.pattern.permute.xlu0 0
  %167 = vperm.xlu0 %166, %v112
  %v168 = vpop.permute.xlu0 %167
  %171 = vset.pattern.permute.xlu0 0
  %172 = vperm.xlu0 %171, %v113
  %v173 = vpop.permute.xlu0 %172
  %176 = vset.pattern.permute.xlu0 0
  %177 = vperm.xlu0 %176, %v114
  %v178 = vpop.permute.xlu0 %177
  %181 = vset.pattern.permute.xlu0 0
  %182 = vperm.xlu0 %181, %v115
  %v183 = vpop.permute.xlu0 %182
  %186 = vset.pattern.permute.xlu0 0
  %187 = vperm.xlu0 %186, %v116
  %v188 = vpop.permute.xlu0 %187
  %v190 = vmul.f32 %v153, %v141
  %v191 = vmul.f32 %v158, %v142
  %v192 = vmul.f32 %v163, %v143
  %v193 = vmul.f32 %v168, %v144
  %v194 = vmul.f32 %v173, %v141
  %v195 = vmul.f32 %v178, %v142
  %v196 = vmul.f32 %v183, %v143
  %v197 = vmul.f32 %v188, %v144
  %vm198 = vcmask 15360
  %v199 = vsel %vm198, %v190, 0.0
  %v200 = vsel %vm198, %v191, 0.0
  %v201 = vadd.f32 %v199, %v200
  %v202 = vsel %vm198, %v192, 0.0
  %v203 = vadd.f32 %v201, %v202
  %v204 = vsel %vm198, %v193, 0.0
  %v205 = vadd.f32 %v203, %v204
  %v206 = vrot.slane %v205, 4
  %v207 = vadd.f32 %v205, %v206
  %v208 = vrot.slane %v207, 2
  %v209 = vadd.f32 %v207, %v208
  %v210 = vrot.slane %v209, 1
  %v211 = vadd.f32 %v209, %v210
  %v212 = vsel %vm198, %v194, 0.0
  %v213 = vsel %vm198, %v195, 0.0
  %v214 = vadd.f32 %v212, %v213
  %v215 = vsel %vm198, %v196, 0.0
  %v216 = vadd.f32 %v214, %v215
  %v217 = vsel %vm198, %v197, 0.0
  %v218 = vadd.f32 %v216, %v217
  %v219 = vrot.slane %v218, 4
  %v220 = vadd.f32 %v218, %v219
  %v221 = vrot.slane %v220, 2
  %v222 = vadd.f32 %v220, %v221
  %v223 = vrot.slane %v222, 1
  %v224 = vadd.f32 %v222, %v223
  %v225 = vadd.f32 %v211, %v149
  %v226 = vadd.f32 %v224, %v149
  %v227 = vmax.f32 %v225, 0.0
  %v228 = vmax.f32 %v226, 0.0
  %v229 = vperm.slane %v227, 0
  %v230 = vperm.slane %v228, 0
  %v231 = vmul.f32 %v229, %v145
  %v232 = vmul.f32 %v229, %v146
  %v233 = vmul.f32 %v229, %v147
  %v234 = vmul.f32 %v229, %v148
  %v235 = vmul.f32 %v230, %v145
  %v236 = vmul.f32 %v230, %v146
  %v237 = vmul.f32 %v230, %v147
  %v238 = vmul.f32 %v230, %v148
  %v239 = vsel %vm198, %v231, 0.0
  %240 = vadd.xlane.f32.xlu0 %v239
  %v241 = vpop.xlane.xlu0 %240
  %v242 = vsel %vm198, %v232, 0.0
  %243 = vadd.xlane.f32.xlu0 %v242
  %v244 = vpop.xlane.xlu0 %243
  %v245 = vsel %vm198, %v233, 0.0
  %246 = vadd.xlane.f32.xlu0 %v245
  %v247 = vpop.xlane.xlu0 %246
  %v248 = vsel %vm198, %v234, 0.0
  %249 = vadd.xlane.f32.xlu0 %v248
  %v250 = vpop.xlane.xlu0 %249
  %v251 = vsel %vm198, %v235, 0.0
  %252 = vadd.xlane.f32.xlu0 %v251
  %v253 = vpop.xlane.xlu0 %252
  %v254 = vsel %vm198, %v236, 0.0
  %255 = vadd.xlane.f32.xlu0 %v254
  %v256 = vpop.xlane.xlu0 %255
  %v257 = vsel %vm198, %v237, 0.0
  %258 = vadd.xlane.f32.xlu0 %v257
  %v259 = vpop.xlane.xlu0 %258
  %v260 = vsel %vm198, %v238, 0.0
  %261 = vadd.xlane.f32.xlu0 %v260
  %v262 = vpop.xlane.xlu0 %261
  %v263 = vadd.f32 %v241, %v145
  %v264 = vadd.f32 %v244, %v146
  %v265 = vadd.f32 %v247, %v147
  %v266 = vadd.f32 %v250, %v148
  %v267 = vadd.f32 %v253, %v145
  %v268 = vadd.f32 %v256, %v146
  %v269 = vadd.f32 %v259, %v147
  %v270 = vadd.f32 %v262, %v148
  %v271 = vmul.f32 %v119, %v141
  %v272 = vmul.f32 %v122, %v142
  %v273 = vmul.f32 %v125, %v143
  %v274 = vmul.f32 %v128, %v144
  %v275 = vmul.f32 %v131, %v141
  %v276 = vmul.f32 %v134, %v142
  %v277 = vmul.f32 %v137, %v143
  %v278 = vmul.f32 %v140, %v144
  %v279 = vsel %vm198, %v271, 0.0
  %v280 = vsel %vm198, %v272, 0.0
  %v281 = vadd.f32 %v279, %v280
  %v282 = vsel %vm198, %v273, 0.0
  %v283 = vadd.f32 %v281, %v282
  %v284 = vsel %vm198, %v274, 0.0
  %v285 = vadd.f32 %v283, %v284
  %v286 = vrot.slane %v285, 4
  %v287 = vadd.f32 %v285, %v286
  %v288 = vrot.slane %v287, 2
  %v289 = vadd.f32 %v287, %v288
  %v290 = vrot.slane %v289, 1
  %v291 = vadd.f32 %v289, %v290
  %v292 = vsel %vm198, %v275, 0.0
  %v293 = vsel %vm198, %v276, 0.0
  %v294 = vadd.f32 %v292, %v293
  %v295 = vsel %vm198, %v277, 0.0
  %v296 = vadd.f32 %v294, %v295
  %v297 = vsel %vm198, %v278, 0.0
  %v298 = vadd.f32 %v296, %v297
  %v299 = vrot.slane %v298, 4
  %v300 = vadd.f32 %v298, %v299
  %v301 = vrot.slane %v300, 2
  %v302 = vadd.f32 %v300, %v301
  %v303 = vrot.slane %v302, 1
  %v304 = vadd.f32 %v302, %v303
  %v305 = vadd.f32 %v291, %v149
  %v306 = vadd.f32 %v304, %v149
  %v307 = vmax.f32 %v305, 0.0
  %v308 = vmax.f32 %v306, 0.0
  %v309 = vperm.slane %v307, 0
  %v310 = vperm.slane %v308, 0
  %v311 = vmul.f32 %v309, %v145
  %v312 = vmul.f32 %v309, %v146
  %v313 = vmul.f32 %v309, %v147
  %v314 = vmul.f32 %v309, %v148
  %v315 = vmul.f32 %v310, %v145
  %v316 = vmul.f32 %v310, %v146
  %v317 = vmul.f32 %v310, %v147
  %v318 = vmul.f32 %v310, %v148
  %v319 = vsel %vm198, %v311, 0.0
  %320 = vadd.xlane.f32.xlu0 %v319
  %v321 = vpop.xlane.xlu0 %320
  %v322 = vsel %vm198, %v312, 0.0
  %323 = vadd.xlane.f32.xlu0 %v322
  %v324 = vpop.xlane.xlu0 %323
  %v325 = vsel %vm198, %v313, 0.0
  %326 = vadd.xlane.f32.xlu0 %v325
  %v327 = vpop.xlane.xlu0 %326
  %v328 = vsel %vm198, %v314, 0.0
  %329 = vadd.xlane.f32.xlu0 %v328
  %v330 = vpop.xlane.xlu0 %329
  %v331 = vsel %vm198, %v315, 0.0
  %332 = vadd.xlane.f32.xlu0 %v331
  %v333 = vpop.xlane.xlu0 %332
  %v334 = vsel %vm198, %v316, 0.0
  %335 = vadd.xlane.f32.xlu0 %v334
  %v336 = vpop.xlane.xlu0 %335
  %v337 = vsel %vm198, %v317, 0.0
  %338 = vadd.xlane.f32.xlu0 %v337
  %v339 = vpop.xlane.xlu0 %338
  %v340 = vsel %vm198, %v318, 0.0
  %341 = vadd.xlane.f32.xlu0 %v340
  %v342 = vpop.xlane.xlu0 %341
  %v343 = vadd.f32 %v321, %v145
  %v344 = vadd.f32 %v324, %v146
  %v345 = vadd.f32 %v327, %v147
  %v346 = vadd.f32 %v330, %v148
  %v347 = vadd.f32 %v333, %v145
  %v348 = vadd.f32 %v336, %v146
  %v349 = vadd.f32 %v339, %v147
  %v350 = vadd.f32 %v342, %v148
  %v351 = vadd.f32 %v263, %v343
  %v352 = vadd.f32 %v264, %v344
  %v353 = vadd.f32 %v265, %v345
  %v354 = vadd.f32 %v266, %v346
  %v355 = vadd.f32 %v267, %v347
  %v356 = vadd.f32 %v268, %v348
  %v357 = vadd.f32 %v269, %v349
  %v358 = vadd.f32 %v270, %v350
  %v359 = vxor.u32 %v351, 2147483648
  %v360 = vxor.u32 %v352, 2147483648
  %v361 = vxor.u32 %v353, 2147483648
  %v362 = vxor.u32 %v354, 2147483648
  %v363 = vxor.u32 %v355, 2147483648
  %v364 = vxor.u32 %v356, 2147483648
  %v365 = vxor.u32 %v357, 2147483648
  %v366 = vxor.u32 %v358, 2147483648
  %v367 = vmul.f32 %v359, 1.442695
  %v368 = vpow.pop %v367
  %v369 = vmul.f32 %v360, 1.442695
  %v370 = vpow.pop %v369
  %v371 = vmul.f32 %v361, 1.442695
  %v372 = vpow.pop %v371
  %v373 = vmul.f32 %v362, 1.442695
  %v374 = vpow.pop %v373
  %v375 = vmul.f32 %v363, 1.442695
  %v376 = vpow.pop %v375
  %v377 = vmul.f32 %v364, 1.442695
  %v378 = vpow.pop %v377
  %v379 = vmul.f32 %v365, 1.442695
  %v380 = vpow.pop %v379
  %v381 = vmul.f32 %v366, 1.442695
  %v382 = vpow.pop %v381
  %v383 = vadd.f32 %v368, 1.0
  %v384 = vadd.f32 %v370, 1.0
  %v385 = vadd.f32 %v372, 1.0
  %v386 = vadd.f32 %v374, 1.0
  %v387 = vadd.f32 %v376, 1.0
  %v388 = vadd.f32 %v378, 1.0
  %v389 = vadd.f32 %v380, 1.0
  %v390 = vadd.f32 %v382, 1.0
  %v391 = vrcp.pop %v383
  %v392 = vmul.f32 %v383, %v391
  %v393 = vsub.f32 1.0, %v392
  %v394 = vmul.f32 %v391, %v393
  %v395 = vadd.f32 %v391, %v394
  %vm396 = vweird.f32 %v383
  %vm397 = vweird.f32 %v391
  %vm398 = vmor %vm396, %vm397
  %v399 = vsel %vm398, %v391, %v395
  %v400 = vand.u32 2147483647, %v383
  %vm401 = vcmp.eq.f32.partialorder %v400, 8.507059e+37
  %v402 = vand.u32 %v383, 2147483648
  %v403 = vor.u32 1.1754944e-38, %v402
  %v404 = vsel %vm401, %v403, %v399
  %v405 = vmul.f32 1.0, %v404
  %v406 = vrcp.pop %v384
  %v407 = vmul.f32 %v384, %v406
  %v408 = vsub.f32 1.0, %v407
  %v409 = vmul.f32 %v406, %v408
  %v410 = vadd.f32 %v406, %v409
  %vm411 = vweird.f32 %v384
  %vm412 = vweird.f32 %v406
  %vm413 = vmor %vm411, %vm412
  %v414 = vsel %vm413, %v406, %v410
  %v415 = vand.u32 2147483647, %v384
  %vm416 = vcmp.eq.f32.partialorder %v415, 8.507059e+37
  %v417 = vand.u32 %v384, 2147483648
  %v418 = vor.u32 1.1754944e-38, %v417
  %v419 = vsel %vm416, %v418, %v414
  %v420 = vmul.f32 1.0, %v419
  %v421 = vrcp.pop %v385
  %v422 = vmul.f32 %v385, %v421
  %v423 = vsub.f32 1.0, %v422
  %v424 = vmul.f32 %v421, %v423
  %v425 = vadd.f32 %v421, %v424
  %vm426 = vweird.f32 %v385
  %vm427 = vweird.f32 %v421
  %vm428 = vmor %vm426, %vm427
  %v429 = vsel %vm428, %v421, %v425
  %v430 = vand.u32 2147483647, %v385
  %vm431 = vcmp.eq.f32.partialorder %v430, 8.507059e+37
  %v432 = vand.u32 %v385, 2147483648
  %v433 = vor.u32 1.1754944e-38, %v432
  %v434 = vsel %vm431, %v433, %v429
  %v435 = vmul.f32 1.0, %v434
  %v436 = vrcp.pop %v386
  %v437 = vmul.f32 %v386, %v436
  %v438 = vsub.f32 1.0, %v437
  %v439 = vmul.f32 %v436, %v438
  %v440 = vadd.f32 %v436, %v439
  %vm441 = vweird.f32 %v386
  %vm442 = vweird.f32 %v436
  %vm443 = vmor %vm441, %vm442
  %v444 = vsel %vm443, %v436, %v440
  %v445 = vand.u32 2147483647, %v386
  %vm446 = vcmp.eq.f32.partialorder %v445, 8.507059e+37
  %v447 = vand.u32 %v386, 2147483648
  %v448 = vor.u32 1.1754944e-38, %v447
  %v449 = vsel %vm446, %v448, %v444
  %v450 = vmul.f32 1.0, %v449
  %v451 = vrcp.pop %v387
  %v452 = vmul.f32 %v387, %v451
  %v453 = vsub.f32 1.0, %v452
  %v454 = vmul.f32 %v451, %v453
  %v455 = vadd.f32 %v451, %v454
  %vm456 = vweird.f32 %v387
  %vm457 = vweird.f32 %v451
  %vm458 = vmor %vm456, %vm457
  %v459 = vsel %vm458, %v451, %v455
  %v460 = vand.u32 2147483647, %v387
  %vm461 = vcmp.eq.f32.partialorder %v460, 8.507059e+37
  %v462 = vand.u32 %v387, 2147483648
  %v463 = vor.u32 1.1754944e-38, %v462
  %v464 = vsel %vm461, %v463, %v459
  %v465 = vmul.f32 1.0, %v464
  %v466 = vrcp.pop %v388
  %v467 = vmul.f32 %v388, %v466
  %v468 = vsub.f32 1.0, %v467
  %v469 = vmul.f32 %v466, %v468
  %v470 = vadd.f32 %v466, %v469
  %vm471 = vweird.f32 %v388
  %vm472 = vweird.f32 %v466
  %vm473 = vmor %vm471, %vm472
  %v474 = vsel %vm473, %v466, %v470
  %v475 = vand.u32 2147483647, %v388
  %vm476 = vcmp.eq.f32.partialorder %v475, 8.507059e+37
  %v477 = vand.u32 %v388, 2147483648
  %v478 = vor.u32 1.1754944e-38, %v477
  %v479 = vsel %vm476, %v478, %v474
  %v480 = vmul.f32 1.0, %v479
  %v481 = vrcp.pop %v389
  %v482 = vmul.f32 %v389, %v481
  %v483 = vsub.f32 1.0, %v482
  %v484 = vmul.f32 %v481, %v483
  %v485 = vadd.f32 %v481, %v484
  %vm486 = vweird.f32 %v389
  %vm487 = vweird.f32 %v481
  %vm488 = vmor %vm486, %vm487
  %v489 = vsel %vm488, %v481, %v485
  %v490 = vand.u32 2147483647, %v389
  %vm491 = vcmp.eq.f32.partialorder %v490, 8.507059e+37
  %v492 = vand.u32 %v389, 2147483648
  %v493 = vor.u32 1.1754944e-38, %v492
  %v494 = vsel %vm491, %v493, %v489
  %v495 = vmul.f32 1.0, %v494
  %v496 = vrcp.pop %v390
  %v497 = vmul.f32 %v390, %v496
  %v498 = vsub.f32 1.0, %v497
  %v499 = vmul.f32 %v496, %v498
  %v500 = vadd.f32 %v496, %v499
  %vm501 = vweird.f32 %v390
  %vm502 = vweird.f32 %v496
  %vm503 = vmor %vm501, %vm502
  %v504 = vsel %vm503, %v496, %v500
  %v505 = vand.u32 2147483647, %v390
  %vm506 = vcmp.eq.f32.partialorder %v505, 8.507059e+37
  %v507 = vand.u32 %v390, 2147483648
  %v508 = vor.u32 1.1754944e-38, %v507
  %v509 = vsel %vm506, %v508, %v504
  %v510 = vmul.f32 1.0, %v509
  %512 = vset.pattern.permute.xlu0 2
  %513 = vperm.xlu0 %512, %v405
  %v514 = vpop.permute.xlu0 %513
  %517 = vset.pattern.permute.xlu0 2
  %518 = vperm.xlu0 %517, %v420
  %v519 = vpop.permute.xlu0 %518
  %522 = vset.pattern.permute.xlu0 2
  %523 = vperm.xlu0 %522, %v435
  %v524 = vpop.permute.xlu0 %523
  %527 = vset.pattern.permute.xlu0 2
  %528 = vperm.xlu0 %527, %v450
  %v529 = vpop.permute.xlu0 %528
  %532 = vset.pattern.permute.xlu0 2
  %533 = vperm.xlu0 %532, %v465
  %v534 = vpop.permute.xlu0 %533
  %537 = vset.pattern.permute.xlu0 2
  %538 = vperm.xlu0 %537, %v480
  %v539 = vpop.permute.xlu0 %538
  %542 = vset.pattern.permute.xlu0 2
  %543 = vperm.xlu0 %542, %v495
  %v544 = vpop.permute.xlu0 %543
  %547 = vset.pattern.permute.xlu0 2
  %548 = vperm.xlu0 %547, %v510
  %v549 = vpop.permute.xlu0 %548
  %v551 = vmul.f32 %v11, %v514
  %v552 = vmul.f32 %v12, %v514
  %v553 = vmul.f32 %v13, %v519
  %v554 = vmul.f32 %v14, %v519
  %v555 = vmul.f32 %v15, %v524
  %v556 = vmul.f32 %v16, %v524
  %v557 = vmul.f32 %v17, %v529
  %v558 = vmul.f32 %v18, %v529
  %v559 = vmul.f32 %v19, %v534
  %v560 = vmul.f32 %v20, %v534
  %v561 = vmul.f32 %v21, %v539
  %v562 = vmul.f32 %v22, %v539
  %v563 = vmul.f32 %v23, %v544
  %v564 = vmul.f32 %v24, %v544
  %v565 = vmul.f32 %v25, %v549
  %v566 = vmul.f32 %v26, %v549
  %567 = vst [vmem:[%s2] sm:$0xff] %v551
  %568 = vst [vmem:[%s2 + $0x8] sm:$0xff] %v552
  %569 = vst [vmem:[%s2 + $0x10] sm:$0xff] %v553
  %570 = vst [vmem:[%s2 + $0x18] sm:$0xff] %v554
  %571 = vst [vmem:[%s2 + $0x20] sm:$0xff] %v555
  %572 = vst [vmem:[%s2 + $0x28] sm:$0xff] %v556
  %573 = vst [vmem:[%s2 + $0x30] sm:$0xff] %v557
  %574 = vst [vmem:[%s2 + $0x38] sm:$0xff] %v558
  %575 = vst [vmem:[%s2 + $0x40] sm:$0xff] %v559
  %576 = vst [vmem:[%s2 + $0x48] sm:$0xff] %v560
  %577 = vst [vmem:[%s2 + $0x50] sm:$0xff] %v561
  %578 = vst [vmem:[%s2 + $0x58] sm:$0xff] %v562
  %579 = vst [vmem:[%s2 + $0x60] sm:$0xff] %v563
  %580 = vst [vmem:[%s2 + $0x68] sm:$0xff] %v564
  %581 = vst [vmem:[%s2 + $0x70] sm:$0xff] %v565
  %582 = vst [vmem:[%s2 + $0x78] sm:$0xff] %v566
  // Predicated region
  $region10: #{channel_gate.1} parent=0 // pred_check
    _
  $region11: #{channel_gate.1} parent=0 // pred_check_branch
    %584 = sbr.rel (0) target = $region13
  $region12: #{channel_gate.1} parent=0 // pred_region
    _
  $region13: #{channel_gate.1} parent=0 // pred_fallthru
    _
  // Predicated region
  $region14: #{channel_gate.1} parent=0 // pred_check
    _
  $region15: #{channel_gate.1} parent=0 // pred_check_branch
    %586 = sbr.rel (0) target = $region17
  $region16: #{channel_gate.1} parent=0 // pred_region
    _
  $region17: #{channel_gate.1} parent=0 // pred_fallthru
    _

</llo_original>
